<compile_context>
chip_gen: v5e
topology: v5e:2x2
jax: 0.10.0
libtpu: 0.0.40
codegen_flags: <defaults>
</compile_context>

<pallas_src>
import functools

import jax
import jax.numpy as jnp
from jax.experimental import pallas as pl
from jax.experimental.pallas import tpu as pltpu

_LANE = 128          # vreg lane width
_ROW_ALIGN = 16      # packed-row tile granularity (bf16 sublane tile)
_TM_PACKED = 2048    # target packed rows per tile (= P * 2048 tokens)


def _round_up(v, m):
    return (v + m - 1) // m * m


# ----------------------------- Pallas kernel -------------------------------

def _mlp_kernel(x_ref, w1_ref, b1_ref, w2_ref, b2_ref, o_ref, *, add_x_input):
    # x_ref:  (TM, P*D_in)   bf16 packed token tile (P tokens per 128-lane row)
    # w1_ref: (P*D_in, P*H)  bf16 block-diagonal
    # b1_ref: (1, P*H)       f32  (tiled P times)
    # w2_ref: (P*H, P*D_out) bf16 block-diagonal
    # b2_ref: (1, P*D_out)   f32  (tiled P times)
    # o_ref:  (TM, P*D_out)  f32
    x = x_ref[...]                                   # bf16, reused for residual

    # Linear 1 (bf16 MXU inputs, f32 accumulate) + tanh-GELU.
    # torch.nn.GELU default is the exact erf form; the tanh approximation
    # differs by <~3e-3 and moves the transcendental onto the EUP slot.
    h = jnp.dot(x, w1_ref[...], preferred_element_type=jnp.float32)
    h = h + b1_ref[...]
    h = jax.nn.gelu(h, approximate=True)

    # Linear 2 (bf16 MXU inputs, f32 accumulate) + ReLU.
    # TODO(synk): on v6e/v7x (bf16 VPU) the bias/GELU/ReLU chain could run in
    # bf16 to halve VALU work; kept f32 so the same kernel stays v5e-correct.
    y = jnp.dot(h.astype(w2_ref.dtype), w2_ref[...],
                preferred_element_type=jnp.float32)
    y = y + b2_ref[...]
    y = jnp.maximum(y, 0.0)

    if add_x_input:
        y = y + x.astype(jnp.float32)                # residual (D_out == D_in)

    o_ref[...] = y.astype(o_ref.dtype)


# ------------------------------- wrapper ------------------------------------

def mlp_block_forward(x, params, *, add_x_input=True):
    """Fused MLPBlock forward.

    x: (B, N, D_in) float32 (or bfloat16)
    params: dict with w1 (D_in, H), b1 (H,), w2 (H, D_out), b2 (D_out,)
    returns (B, N, D_out) in x.dtype
    """
    B, N, D_in = x.shape
    w1, b1, w2, b2 = params["w1"], params["b1"], params["w2"], params["b2"]
    H = w1.shape[1]
    D_out = w2.shape[1]
    if add_x_input and D_out != D_in:
        raise ValueError("add_x_input=True requires D_out == D_in")

    M = B * N
    out_dtype = x.dtype

    # Token packing factor: P tokens per 128-lane row with block-diagonal
    # weights keeps per-token math exact while making every HBM row
    # lane-dense.  Falls back to P=1 (plain unpadded layout, masked lanes)
    # when the feature dims don't tile 128 lanes evenly.
    if D_in == D_out and _LANE % D_in == 0 and (_LANE // D_in) * H <= 2048:
        P = _LANE // D_in
    else:
        P = 1

    Mp = pl.cdiv(M, P)                     # packed rows needed
    # Tiling: big tiles amortize the ~0.35 us/grid-step overhead; force >=2
    # tiles once there's enough work so both v7x TensorCores get a share.
    n_tiles = pl.cdiv(Mp, _TM_PACKED)
    if n_tiles == 1 and Mp >= 2 * _ROW_ALIGN:
        n_tiles = 2
    if n_tiles == 1:
        TMp = Mp                           # full-dim block: any row count legal
    else:
        TMp = _round_up(pl.cdiv(Mp, n_tiles), _ROW_ALIGN)
    Mp_pad = TMp * n_tiles
    M_pad = Mp_pad * P

    # x -> bf16 (halves HBM read bytes; fuses with the producer inside a
    # larger jit) then a free contiguous reshape into packed rows.  A pad
    # pass only happens when the token count doesn't divide the tiling.
    x2d = x.reshape(M, D_in).astype(jnp.bfloat16)
    if M_pad != M:
        x2d = jnp.pad(x2d, ((0, M_pad - M), (0, 0)))
    xp = x2d.reshape(Mp_pad, P * D_in)

    # Block-diagonal bf16 weights (P copies on the diagonal), tiled f32 biases.
    eye = jnp.eye(P, dtype=jnp.float32)
    w1p = jnp.kron(eye, w1.astype(jnp.float32)).astype(jnp.bfloat16)
    w2p = jnp.kron(eye, w2.astype(jnp.float32)).astype(jnp.bfloat16)
    b1p = jnp.tile(b1.astype(jnp.float32), P).reshape(1, P * H)
    b2p = jnp.tile(b2.astype(jnp.float32), P).reshape(1, P * D_out)

    kernel = functools.partial(_mlp_kernel, add_x_input=add_x_input)

    cost = pl.CostEstimate(
        flops=2 * M_pad * (D_in * H + H * D_out),
        transcendentals=M_pad * H,                         # tanh inside GELU
        bytes_accessed=(M_pad * D_in * 2                   # bf16 x in
                        + M_pad * D_out * out_dtype.itemsize   # out
                        + w1p.size * 2 + w2p.size * 2      # bf16 weights
                        + b1p.size * 4 + b2p.size * 4),    # f32 biases
    )

    outp = pl.pallas_call(
        kernel,
        out_shape=jax.ShapeDtypeStruct((Mp_pad, P * D_out), out_dtype),
        grid=(n_tiles,),
        in_specs=[
            pl.BlockSpec((TMp, P * D_in), lambda i: (i, 0)),
            # Weights / biases: constant index_map -> kept resident in VMEM,
            # no re-DMA across grid steps.
            pl.BlockSpec((P * D_in, P * H), lambda i: (0, 0)),
            pl.BlockSpec((1, P * H), lambda i: (0, 0)),
            pl.BlockSpec((P * H, P * D_out), lambda i: (0, 0)),
            pl.BlockSpec((1, P * D_out), lambda i: (0, 0)),
        ],
        out_specs=pl.BlockSpec((TMp, P * D_out), lambda i: (i, 0)),
        compiler_params=pltpu.CompilerParams(
            dimension_semantics=("parallel",)),
        cost_estimate=cost,
    )(xp, w1p, b1p, w2p, b2p)

    out2d = outp.reshape(M_pad, D_out)
    if M_pad != M:                       # slice only when padding was needed
        out2d = out2d[:M]
    return out2d.reshape(B, N, D_out)


# --------------------------- parameter init --------------------------------

def init_mlp_params(key, ipt_dim, hidden_dim, out_dim, dtype=jnp.float32):
    """Deterministic init mimicking torch.nn.Linear (uniform +/- 1/sqrt(fan_in))."""
    k1, k2, k3, k4 = jax.random.split(key, 4)
    bound1 = 1.0 / (ipt_dim ** 0.5)
    bound2 = 1.0 / (hidden_dim ** 0.5)
    return {
        # stored as (in, out) so the kernel does x @ W directly
        "w1": jax.random.uniform(k1, (ipt_dim, hidden_dim), dtype,
                                 minval=-bound1, maxval=bound1),
        "b1": jax.random.uniform(k2, (hidden_dim,), dtype,
                                 minval=-bound1, maxval=bound1),
        "w2": jax.random.uniform(k3, (hidden_dim, out_dim), dtype,
                                 minval=-bound2, maxval=bound2),
        "b2": jax.random.uniform(k4, (out_dim,), dtype,
                                 minval=-bound2, maxval=bound2),
    }


# ------------------------------- main ---------------------------------------

if __name__ == "__main__":
    # MLPBlock(ipt_dim=32, embed_dim=32, init_layers=["ff_64_gel", "ff_-1_rel"],
    #          add_x_input=True, dropout=0.0)
    # dropout=0.0 => no Dropout module inserted; identity at eval anyway.
    B, N = 2, 8
    ipt_dim, embed_dim, hidden_dim = 32, 32, 64

    key = jax.random.PRNGKey(0)
    kx, kp = jax.random.split(key)

    x = jax.random.normal(kx, (B, N, ipt_dim), dtype=jnp.float32)
    params = init_mlp_params(kp, ipt_dim, hidden_dim, embed_dim)

    fwd = jax.jit(functools.partial(mlp_block_forward, add_x_input=True))
    out = jax.block_until_ready(fwd(x, params))

    # Pure-JAX f32 reference of the module math (exact erf GELU).  Kernel uses
    # bf16 MXU inputs + tanh GELU => loosened tolerance.
    xf = x.reshape(-1, ipt_dim)
    ref = jax.nn.gelu(xf @ params["w1"] + params["b1"], approximate=False)
    ref = jnp.maximum(ref @ params["w2"] + params["b2"], 0.0)
    ref = (ref + xf).reshape(B, N, embed_dim)

    assert out.shape == (B, N, embed_dim)
    err = float(jnp.max(jnp.abs(out - ref)))
    assert jnp.allclose(out, ref, atol=5e-2, rtol=5e-2), err

    print("KERNEL_OK")
</pallas_src>

<mosaic_0001>
module attributes {stable_mosaic.version = 11 : i64} {
  func.func @_mlp_kernel(%arg0: i32, %arg1: memref<4x128xbf16, #tpu.memory_space<vmem>>, %arg2: memref<128x256xbf16, #tpu.memory_space<vmem>>, %arg3: memref<1x256xf32, #tpu.memory_space<vmem>>, %arg4: memref<256x128xbf16, #tpu.memory_space<vmem>>, %arg5: memref<1x128xf32, #tpu.memory_space<vmem>>, %arg6: memref<4x128xf32, #tpu.memory_space<vmem>>) attributes {dimension_semantics = [#tpu.dimension_semantics<parallel>], iteration_bounds = array<i64: 1>, scalar_prefetch = 0 : i64, scratch_operands = 0 : i64, tpu.core_type = #tpu.core_type<tc>, window_params = [{transform_indices = @transform_0, window_bounds = array<i64: 4, 128>}, {pipeline_mode = #tpu.pipeline_mode<synchronous>, transform_indices = @transform_1, window_bounds = array<i64: 128, 256>}, {pipeline_mode = #tpu.pipeline_mode<synchronous>, transform_indices = @transform_2, window_bounds = array<i64: 1, 256>}, {pipeline_mode = #tpu.pipeline_mode<synchronous>, transform_indices = @transform_3, window_bounds = array<i64: 256, 128>}, {pipeline_mode = #tpu.pipeline_mode<synchronous>, transform_indices = @transform_4, window_bounds = array<i64: 1, 128>}, {transform_indices = @transform_5, window_bounds = array<i64: 4, 128>}]} {
    %c0 = arith.constant 0 : index
    %c0_0 = arith.constant 0 : index
    %0 = vector.load %arg1[%c0, %c0_0] : memref<4x128xbf16, #tpu.memory_space<vmem>>, vector<4x128xbf16>
    %c0_1 = arith.constant 0 : index
    %c0_2 = arith.constant 0 : index
    %1 = vector.load %arg2[%c0_1, %c0_2] : memref<128x256xbf16, #tpu.memory_space<vmem>>, vector<128x256xbf16>
    %cst = arith.constant dense<0.000000e+00> : vector<4x256xf32>
    %2 = tpu.matmul %0, %1, %cst {dimension_numbers = #tpu.dot_dimension_numbers<[1], [0], [0], [1], [0, 0, 1, 1], [], []>} : vector<4x128xbf16>, vector<128x256xbf16>, vector<4x256xf32> -> vector<4x256xf32>
    %c0_3 = arith.constant 0 : index
    %c0_4 = arith.constant 0 : index
    %3 = vector.load %arg3[%c0_3, %c0_4] : memref<1x256xf32, #tpu.memory_space<vmem>>, vector<1x256xf32>
    %4 = vector.broadcast %3 : vector<1x256xf32> to vector<4x256xf32>
    %5 = arith.addf %2, %4 : vector<4x256xf32>
    %6 = arith.mulf %5, %5 : vector<4x256xf32>
    %7 = arith.mulf %5, %6 : vector<4x256xf32>
    %cst_5 = arith.constant 4.471500e-02 : f32
    %8 = vector.broadcast %cst_5 : f32 to vector<4x256xf32>
    %9 = arith.mulf %8, %7 : vector<4x256xf32>
    %10 = arith.addf %5, %9 : vector<4x256xf32>
    %cst_6 = arith.constant 0.797884583 : f32
    %11 = vector.broadcast %cst_6 : f32 to vector<4x256xf32>
    %12 = arith.mulf %11, %10 : vector<4x256xf32>
    %13 = math.tanh %12 : vector<4x256xf32>
    %cst_7 = arith.constant 1.000000e+00 : f32
    %14 = vector.broadcast %cst_7 : f32 to vector<4x256xf32>
    %15 = arith.addf %14, %13 : vector<4x256xf32>
    %cst_8 = arith.constant 5.000000e-01 : f32
    %16 = vector.broadcast %cst_8 : f32 to vector<4x256xf32>
    %17 = arith.mulf %16, %15 : vector<4x256xf32>
    %18 = arith.mulf %5, %17 : vector<4x256xf32>
    %19 = arith.truncf %18 : vector<4x256xf32> to vector<4x256xbf16>
    %c0_9 = arith.constant 0 : index
    %c0_10 = arith.constant 0 : index
    %20 = vector.load %arg4[%c0_9, %c0_10] : memref<256x128xbf16, #tpu.memory_space<vmem>>, vector<256x128xbf16>
    %cst_11 = arith.constant dense<0.000000e+00> : vector<4x128xf32>
    %21 = tpu.matmul %19, %20, %cst_11 {dimension_numbers = #tpu.dot_dimension_numbers<[1], [0], [0], [1], [0, 0, 1, 1], [], []>} : vector<4x256xbf16>, vector<256x128xbf16>, vector<4x128xf32> -> vector<4x128xf32>
    %c0_12 = arith.constant 0 : index
    %c0_13 = arith.constant 0 : index
    %22 = vector.load %arg5[%c0_12, %c0_13] : memref<1x128xf32, #tpu.memory_space<vmem>>, vector<1x128xf32>
    %23 = vector.broadcast %22 : vector<1x128xf32> to vector<4x128xf32>
    %24 = arith.addf %21, %23 : vector<4x128xf32>
    %cst_14 = arith.constant 0.000000e+00 : f32
    %25 = vector.broadcast %cst_14 : f32 to vector<4x128xf32>
    %26 = arith.maximumf %24, %25 : vector<4x128xf32>
    %27 = arith.extf %0 : vector<4x128xbf16> to vector<4x128xf32>
    %28 = arith.addf %26, %27 : vector<4x128xf32>
    %c0_15 = arith.constant 0 : index
    %c0_16 = arith.constant 0 : index
    %29 = vector.load %arg6[%c0_15, %c0_16] : memref<4x128xf32, #tpu.memory_space<vmem>>, vector<4x128xf32>
    tpu.vector_store %arg6[%c0_15, %c0_16], %28 {strides = array<i32>} : memref<4x128xf32, #tpu.memory_space<vmem>>, vector<4x128xf32>,
    return
  }
  func.func @transform_0(%arg0: i32) -> (i32, i32) {
    %c0_i32 = arith.constant 0 : i32
    %c0_i32_0 = arith.constant 0 : i32
    return %arg0, %c0_i32 : i32, i32
  }
  func.func @transform_1(%arg0: i32) -> (i32, i32) {
    %c0_i32 = arith.constant 0 : i32
    %c0_i32_0 = arith.constant 0 : i32
    %c0_i32_1 = arith.constant 0 : i32
    return %c0_i32, %c0_i32_0 : i32, i32
  }
  func.func @transform_2(%arg0: i32) -> (i32, i32) {
    %c0_i32 = arith.constant 0 : i32
    %c0_i32_0 = arith.constant 0 : i32
    %c0_i32_1 = arith.constant 0 : i32
    return %c0_i32, %c0_i32_0 : i32, i32
  }
  func.func @transform_3(%arg0: i32) -> (i32, i32) {
    %c0_i32 = arith.constant 0 : i32
    %c0_i32_0 = arith.constant 0 : i32
    %c0_i32_1 = arith.constant 0 : i32
    return %c0_i32, %c0_i32_0 : i32, i32
  }
  func.func @transform_4(%arg0: i32) -> (i32, i32) {
    %c0_i32 = arith.constant 0 : i32
    %c0_i32_0 = arith.constant 0 : i32
    %c0_i32_1 = arith.constant 0 : i32
    return %c0_i32, %c0_i32_0 : i32, i32
  }
  func.func @transform_5(%arg0: i32) -> (i32, i32) {
    %c0_i32 = arith.constant 0 : i32
    %c0_i32_0 = arith.constant 0 : i32
    return %arg0, %c0_i32 : i32, i32
  }
}

</mosaic_0001>

<llo_original>
// kernel: tile.13
$region0: #{tile.13}
  #allocation0 [shape = 's32[1]{0}', space=sflag, size = 0x4, scoped, tag = 'scoped memory for tile.13']
  %s0 = inlined_call_operand.vmem [shape: f32[64], index: 0, kind: input, shape index: {}]
  %s1 = inlined_call_operand.vmem [shape: f32[4,64], index: 1, kind: output, shape index: {}]
  // Predicated region
  $region2: #{tile.13} parent=0 // pred_check
    _
  $region3: #{tile.13} parent=0 // pred_check_branch
    %3 = sbr.rel (0) target = $region5
  $region4: #{tile.13} parent=0 // pred_region
    _
  $region5: #{tile.13} parent=0 // pred_fallthru
    _
  %v4 = vld [vmem:[%s0] ss:$0 sm:$0xff]
  %5 = vst [vmem:[%s1] sm:$0xf] %v4

// kernel: tile.14
$region0: #{tile.14}
  %s0 = inlined_call_operand.vmem [shape: f32[4,64], index: 0, kind: input, shape index: {}]
  %s1 = inlined_call_operand.vmem [shape: f32[1,256], index: 1, kind: output, shape index: {}]
  $region1: #{tile.14} parent=0
    #allocation0 [shape = 'u8[8192]{0}', space=vmem, size = 0x2000, scoped, tag = 'scoped mem for output reshape']
    #allocation1 [shape = 'u8[4096]{0}', space=vmem, size = 0x1000, scoped, tag = 'scoped mem for input reshape']
    %s3 = ssub.s32 16, 1
    %v4 = vld [vmem:[%s0] sm:%s3]
    %5 = vst [vmem:[#allocation1] sm:%s3] %v4
    %s6 = smov 3
    %v7 = vld [vmem:[#allocation1] ss:$2 sm:%s6]
    %vm8 = vcmask 523264
    %9 = vst.msk [vmem:[#allocation0] ss:$8 sm:$0x3] %vm8, %v7
    %s10 = scalar_lea.vmem [#allocation1], 1
    %s11 = smov 3
    %v12 = vld [vmem:[%s10] ss:$2 sm:%s11]
    %13 = vrot.lane.b32.xlu0 %v12, 64
    %v14 = vpop.permute.xlu0 %13
    %vm15 = vcmask 1048064
    %16 = vst.msk [vmem:[#allocation0] ss:$8 sm:$0x3] %vm15, %v14
    %s18 = ssub.s32 2, 1
    %v19 = vld [vmem:[#allocation0] sm:%s18]
    %s21 = ssub.s32 2, 1
    %22 = vst [vmem:[%s1] sm:%s21] %v19
    %s23 = scalar_lea.vmem [#allocation0], 8
    %v24 = vld [vmem:[%s23] sm:%s18]
    %s26 = ssub.s32 2, 1
    %s27 = scalar_lea.vmem %s1, 1
    %28 = vst [vmem:[%s27] sm:%s26] %v24

// kernel: tile.18
$region0: #{tile.18}
  #allocation0 [shape = 's32[1]{0}', space=sflag, size = 0x4, scoped, tag = 'scoped memory for tile.18']
  %s0 = inlined_call_operand.vmem [shape: f32[32], index: 0, kind: input, shape index: {}]
  %s1 = inlined_call_operand.vmem [shape: f32[4,32], index: 1, kind: output, shape index: {}]
  // Predicated region
  $region2: #{tile.18} parent=0 // pred_check
    _
  $region3: #{tile.18} parent=0 // pred_check_branch
    %3 = sbr.rel (0) target = $region5
  $region4: #{tile.18} parent=0 // pred_region
    _
  $region5: #{tile.18} parent=0 // pred_fallthru
    _
  %v4 = vld [vmem:[%s0] ss:$0 sm:$0xff]
  %5 = vst [vmem:[%s1] sm:$0xf] %v4

// kernel: tile.19
$region0: #{tile.19}
  %s0 = inlined_call_operand.vmem [shape: f32[4,32], index: 0, kind: input, shape index: {}]
  %s1 = inlined_call_operand.vmem [shape: f32[1,128], index: 1, kind: output, shape index: {}]
  $region1: #{tile.19} parent=0
    #allocation0 [shape = 'u8[4096]{0}', space=vmem, size = 0x1000, scoped, tag = 'scoped mem for output reshape']
    #allocation1 [shape = 'u8[4096]{0}', space=vmem, size = 0x1000, scoped, tag = 'scoped mem for input reshape']
    %s3 = ssub.s32 16, 1
    %v4 = vld [vmem:[%s0] sm:%s3]
    %5 = vst [vmem:[#allocation1] sm:%s3] %v4
    %v6 = vld [vmem:[#allocation1] sm:$0x1]
    %vm7 = vcmask 261120
    %8 = vst.msk [vmem:[#allocation0] sm:$0x1] %vm7, %v6
    %s9 = scalar_lea.vmem [#allocation1], 3
    %v10 = vld [vmem:[%s9] sm:$0x1]
    %11 = vrot.lane.b32.xlu0 %v10, 96
    %v12 = vpop.permute.xlu0 %11
    %vm13 = vcmask 1048320
    %14 = vst.msk [vmem:[#allocation0] sm:$0x1] %vm13, %v12
    %s15 = scalar_lea.vmem [#allocation1], 2
    %v16 = vld [vmem:[%s15] sm:$0x1]
    %17 = vrot.lane.b32.xlu0 %v16, 64
    %v18 = vpop.permute.xlu0 %17
    %vm19 = vcmask 785920
    %20 = vst.msk [vmem:[#allocation0] sm:$0x1] %vm19, %v18
    %s21 = scalar_lea.vmem [#allocation1], 1
    %v22 = vld [vmem:[%s21] sm:$0x1]
    %23 = vrot.lane.b32.xlu0 %v22, 32
    %v24 = vpop.permute.xlu0 %23
    %vm25 = vcmask 523520
    %26 = vst.msk [vmem:[#allocation0] sm:$0x1] %vm25, %v24
    %s28 = ssub.s32 2, 1
    %v29 = vld [vmem:[#allocation0] sm:%s28]
    %s31 = ssub.s32 2, 1
    %32 = vst [vmem:[%s1] sm:%s31] %v29

// kernel: mlp_block_forward.1
$region0: #{mlp_block_forward.1}
  #allocation0 [shape = 'u32[]', space=smem, size = 0x4, offset = 0x4, fixed_abs, tag = 'smem constant byte address 0x4 - core index']
  #allocation1 [shape = 'u32[72,128]{1,0:T(1,128)}', space=vmem, size = 0x9000, scoped, tag = 'internal scratch']
  %s0 = inlined_call_operand.vmem [shape: bf16[4,128], index: 0, kind: input, shape index: {}]
  %s1 = inlined_call_operand.vmem [shape: bf16[128,256], index: 1, kind: input, shape index: {}]
  %s2 = inlined_call_operand.vmem [shape: f32[1,256], index: 2, kind: input, shape index: {}]
  %s3 = inlined_call_operand.vmem [shape: bf16[256,128], index: 3, kind: input, shape index: {}]
  %s4 = inlined_call_operand.vmem [shape: f32[1,128], index: 4, kind: input, shape index: {}]
  %s5 = inlined_call_operand.vmem [shape: f32[4,128], index: 5, kind: output, shape index: {}]
  %s6 = sld [smem:[#allocation0]]
  $region30: #{mlp_block_forward.1} parent=0
    _
  %s8 = ssub.s32 1, %s6
  %s9 = scalar_select 0, %s8, %s6
  // Predicated region
  $region2: #{mlp_block_forward.1} parent=0 // pred_check
    _
  $region3: #{mlp_block_forward.1} parent=0 // pred_check_branch
    %11 = sbr.rel (0) target = $region5
  $region4: #{mlp_block_forward.1} parent=0 // pred_region
    _
  $region5: #{mlp_block_forward.1} parent=0 // pred_fallthru
    _
  // Predicated region
  $region6: #{mlp_block_forward.1} parent=0 // pred_check
    _
  $region7: #{mlp_block_forward.1} parent=0 // pred_check_branch
    %13 = sbr.rel (0) target = $region9
  $region8: #{mlp_block_forward.1} parent=0 // pred_region
    _
  $region9: #{mlp_block_forward.1} parent=0 // pred_fallthru
    _
  // Predicated region
  $region10: #{mlp_block_forward.1} parent=0 // pred_check
    _
  $region11: #{mlp_block_forward.1} parent=0 // pred_check_branch
    %15 = sbr.rel (0) target = $region13
  $region12: #{mlp_block_forward.1} parent=0 // pred_region
    _
  $region13: #{mlp_block_forward.1} parent=0 // pred_fallthru
    _
  // Predicated region
  $region14: #{mlp_block_forward.1} parent=0 // pred_check
    _
  $region15: #{mlp_block_forward.1} parent=0 // pred_check_branch
    %17 = sbr.rel (0) target = $region17
  $region16: #{mlp_block_forward.1} parent=0 // pred_region
    _
  $region17: #{mlp_block_forward.1} parent=0 // pred_fallthru
    _
  // Predicated region
  $region18: #{mlp_block_forward.1} parent=0 // pred_check
    _
  $region19: #{mlp_block_forward.1} parent=0 // pred_check_branch
    %19 = sbr.rel (0) target = $region21
  $region20: #{mlp_block_forward.1} parent=0 // pred_region
    _
  $region21: #{mlp_block_forward.1} parent=0 // pred_fallthru
    _
  %v20 = vld [vmem:[%s0] sm:$0x3]
  %v21 = vld [vmem:[%s1] sm:$0xff]
  %v22 = vld [vmem:[%s1 + $0x8] sm:$0xff]
  %v23 = vld [vmem:[%s1 + $0x10] sm:$0xff]
  %v24 = vld [vmem:[%s1 + $0x18] sm:$0xff]
  %v25 = vld [vmem:[%s1 + $0x20] sm:$0xff]
  %v26 = vld [vmem:[%s1 + $0x28] sm:$0xff]
  %v27 = vld [vmem:[%s1 + $0x30] sm:$0xff]
  %v28 = vld [vmem:[%s1 + $0x38] sm:$0xff]
  %v29 = vld [vmem:[%s1 + $0x40] sm:$0xff]
  %v30 = vld [vmem:[%s1 + $0x48] sm:$0xff]
  %v31 = vld [vmem:[%s1 + $0x50] sm:$0xff]
  %v32 = vld [vmem:[%s1 + $0x58] sm:$0xff]
  %v33 = vld [vmem:[%s1 + $0x60] sm:$0xff]
  %v34 = vld [vmem:[%s1 + $0x68] sm:$0xff]
  %v35 = vld [vmem:[%s1 + $0x70] sm:$0xff]
  %v36 = vld [vmem:[%s1 + $0x78] sm:$0xff]
  %v37 = vld [vmem:[%s2] sm:$0x3]
  %v39 = vperm.slane %v37, 0
  %v40 = vperm.slane %v37, 1
  %v59 = vunpack.c.l.b16 %v21
  %v60 = vunpack.c.h.b16 %v21
  %v61 = vunpack.c.l.b16 %v22
  %v62 = vunpack.c.h.b16 %v22
  %v63 = vunpack.c.l.b16 %v23
  %v64 = vunpack.c.h.b16 %v23
  %v65 = vunpack.c.l.b16 %v24
  %v66 = vunpack.c.h.b16 %v24
  %v67 = vunpack.c.l.b16 %v25
  %v68 = vunpack.c.h.b16 %v25
  %v69 = vunpack.c.l.b16 %v26
  %v70 = vunpack.c.h.b16 %v26
  %v71 = vunpack.c.l.b16 %v27
  %v72 = vunpack.c.h.b16 %v27
  %v73 = vunpack.c.l.b16 %v28
  %v74 = vunpack.c.h.b16 %v28
  %v75 = vunpack.c.l.b16 %v29
  %v76 = vunpack.c.h.b16 %v29
  %v77 = vunpack.c.l.b16 %v30
  %v78 = vunpack.c.h.b16 %v30
  %v79 = vunpack.c.l.b16 %v31
  %v80 = vunpack.c.h.b16 %v31
  %v81 = vunpack.c.l.b16 %v32
  %v82 = vunpack.c.h.b16 %v32
  %v83 = vunpack.c.l.b16 %v33
  %v84 = vunpack.c.h.b16 %v33
  %v85 = vunpack.c.l.b16 %v34
  %v86 = vunpack.c.h.b16 %v34
  %v87 = vunpack.c.l.b16 %v35
  %v88 = vunpack.c.h.b16 %v35
  %v89 = vunpack.c.l.b16 %v36
  %v90 = vunpack.c.h.b16 %v36
  %v91 = vpack.c.b16 %v61, %v59
  %v92 = vpack.c.b16 %v62, %v60
  %v93 = vpack.c.b16 %v65, %v63
  %v94 = vpack.c.b16 %v66, %v64
  %v95 = vpack.c.b16 %v69, %v67
  %v96 = vpack.c.b16 %v70, %v68
  %v97 = vpack.c.b16 %v73, %v71
  %v98 = vpack.c.b16 %v74, %v72
  %v99 = vpack.c.b16 %v77, %v75
  %v100 = vpack.c.b16 %v78, %v76
  %v101 = vpack.c.b16 %v81, %v79
  %v102 = vpack.c.b16 %v82, %v80
  %v103 = vpack.c.b16 %v85, %v83
  %v104 = vpack.c.b16 %v86, %v84
  %v105 = vpack.c.b16 %v89, %v87
  %v106 = vpack.c.b16 %v90, %v88
  %123 = vmatpush.bf16.msra.mxu0 %v105
  %124 = vmatpush.bf16.msra.mxu0 %v103
  %125 = vmatpush.bf16.msra.mxu0 %v101
  %126 = vmatpush.bf16.msra.mxu0 %v99
  %127 = vmatpush.bf16.msra.mxu0 %v97
  %128 = vmatpush.bf16.msra.mxu0 %v95
  %129 = vmatpush.bf16.msra.mxu0 %v93
  %130 = vmatpush.bf16.msra.mxu0 %v91
  %131 = vmatmul.bf16.gmra.mxu0 %v20
  %v132 = vpop.f32.mrf.mxu0
  %v133 = vadd.f32 %v39, %v132
  %v134 = vpop.f32.mrf.mxu0
  %135 = vdwg.mxu0
  %136 = vmatpush.bf16.msra.mxu0 %v106
  %137 = vmatpush.bf16.msra.mxu0 %v104
  %138 = vmatpush.bf16.msra.mxu0 %v102
  %139 = vmatpush.bf16.msra.mxu0 %v100
  %140 = vmatpush.bf16.msra.mxu0 %v98
  %141 = vmatpush.bf16.msra.mxu0 %v96
  %142 = vmatpush.bf16.msra.mxu0 %v94
  %143 = vmatpush.bf16.msra.mxu0 %v92
  %144 = vmatmul.bf16.gmra.mxu0 %v20
  %v145 = vpop.f32.mrf.mxu0
  %v146 = vadd.f32 %v40, %v145
  %v147 = vpop.f32.mrf.mxu0
  %148 = vdwg.mxu0
  %v149 = vmul.f32 %v133, %v133
  %v150 = vmul.f32 %v146, %v146
  %v151 = vmul.f32 %v133, %v149
  %v152 = vmul.f32 %v146, %v150
  %v153 = vmul.f32 %v151, 0.044715
  %v154 = vmul.f32 %v152, 0.044715
  %v155 = vadd.f32 %v133, %v153
  %v156 = vadd.f32 %v146, %v154
  %v157 = vmul.f32 %v155, 0.7978846
  %v158 = vmul.f32 %v156, 0.7978846
  %v159 = vtanh.pop %v157
  %v160 = vtanh.pop %v158
  %v161 = vadd.f32 %v159, 1.0
  %v162 = vadd.f32 %v160, 1.0
  %v163 = vmul.f32 %v161, 0.5
  %v164 = vmul.f32 %v162, 0.5
  %v165 = vmul.f32 %v133, %v163
  %v166 = vmul.f32 %v146, %v164
  %v167 = vpack.c.bf16 %v165, %v165
  %v168 = vpack.c.bf16 %v166, %v166
  %v169 = vld [vmem:[%s3] sm:$0xf]
  %v170 = vld [vmem:[%s3 + $0x4] sm:$0xf]
  %v171 = vld [vmem:[%s3 + $0x8] sm:$0xf]
  %v172 = vld [vmem:[%s3 + $0xc] sm:$0xf]
  %v173 = vld [vmem:[%s3 + $0x10] sm:$0xf]
  %v174 = vld [vmem:[%s3 + $0x14] sm:$0xf]
  %v175 = vld [vmem:[%s3 + $0x18] sm:$0xf]
  %v176 = vld [vmem:[%s3 + $0x1c] sm:$0xf]
  %v177 = vld [vmem:[%s3 + $0x20] sm:$0xf]
  %v178 = vld [vmem:[%s3 + $0x24] sm:$0xf]
  %v179 = vld [vmem:[%s3 + $0x28] sm:$0xf]
  %v180 = vld [vmem:[%s3 + $0x2c] sm:$0xf]
  %v181 = vld [vmem:[%s3 + $0x30] sm:$0xf]
  %v182 = vld [vmem:[%s3 + $0x34] sm:$0xf]
  %v183 = vld [vmem:[%s3 + $0x38] sm:$0xf]
  %v184 = vld [vmem:[%s3 + $0x3c] sm:$0xf]
  %v185 = vld [vmem:[%s3 + $0x40] sm:$0xf]
  %v186 = vld [vmem:[%s3 + $0x44] sm:$0xf]
  %v187 = vld [vmem:[%s3 + $0x48] sm:$0xf]
  %v188 = vld [vmem:[%s3 + $0x4c] sm:$0xf]
  %v189 = vld [vmem:[%s3 + $0x50] sm:$0xf]
  %v190 = vld [vmem:[%s3 + $0x54] sm:$0xf]
  %v191 = vld [vmem:[%s3 + $0x58] sm:$0xf]
  %v192 = vld [vmem:[%s3 + $0x5c] sm:$0xf]
  %v193 = vld [vmem:[%s3 + $0x60] sm:$0xf]
  %v194 = vld [vmem:[%s3 + $0x64] sm:$0xf]
  %v195 = vld [vmem:[%s3 + $0x68] sm:$0xf]
  %v196 = vld [vmem:[%s3 + $0x6c] sm:$0xf]
  %v197 = vld [vmem:[%s3 + $0x70] sm:$0xf]
  %v198 = vld [vmem:[%s3 + $0x74] sm:$0xf]
  %v199 = vld [vmem:[%s3 + $0x78] sm:$0xf]
  %v200 = vld [vmem:[%s3 + $0x7c] sm:$0xf]
  %v201 = vld [vmem:[%s4] sm:$0x1]
  %v203 = vperm.slane %v201, 0
  %v237 = vunpack.c.l.b16 %v169
  %v238 = vunpack.c.l.b16 %v170
  %v239 = vunpack.c.l.b16 %v171
  %v240 = vunpack.c.l.b16 %v172
  %v241 = vunpack.c.l.b16 %v173
  %v242 = vunpack.c.l.b16 %v174
  %v243 = vunpack.c.l.b16 %v175
  %v244 = vunpack.c.l.b16 %v176
  %v245 = vunpack.c.l.b16 %v177
  %v246 = vunpack.c.l.b16 %v178
  %v247 = vunpack.c.l.b16 %v179
  %v248 = vunpack.c.l.b16 %v180
  %v249 = vunpack.c.l.b16 %v181
  %v250 = vunpack.c.l.b16 %v182
  %v251 = vunpack.c.l.b16 %v183
  %v252 = vunpack.c.l.b16 %v184
  %v253 = vunpack.c.l.b16 %v185
  %v254 = vunpack.c.l.b16 %v186
  %v255 = vunpack.c.l.b16 %v187
  %v256 = vunpack.c.l.b16 %v188
  %v257 = vunpack.c.l.b16 %v189
  %v258 = vunpack.c.l.b16 %v190
  %v259 = vunpack.c.l.b16 %v191
  %v260 = vunpack.c.l.b16 %v192
  %v261 = vunpack.c.l.b16 %v193
  %v262 = vunpack.c.l.b16 %v194
  %v263 = vunpack.c.l.b16 %v195
  %v264 = vunpack.c.l.b16 %v196
  %v265 = vunpack.c.l.b16 %v197
  %v266 = vunpack.c.l.b16 %v198
  %v267 = vunpack.c.l.b16 %v199
  %v268 = vunpack.c.l.b16 %v200
  %v269 = vpack.c.b16 %v238, %v237
  %v270 = vpack.c.b16 %v240, %v239
  %v271 = vpack.c.b16 %v242, %v241
  %v272 = vpack.c.b16 %v244, %v243
  %v273 = vpack.c.b16 %v246, %v245
  %v274 = vpack.c.b16 %v248, %v247
  %v275 = vpack.c.b16 %v250, %v249
  %v276 = vpack.c.b16 %v252, %v251
  %v277 = vpack.c.b16 %v254, %v253
  %v278 = vpack.c.b16 %v256, %v255
  %v279 = vpack.c.b16 %v258, %v257
  %v280 = vpack.c.b16 %v260, %v259
  %v281 = vpack.c.b16 %v262, %v261
  %v282 = vpack.c.b16 %v264, %v263
  %v283 = vpack.c.b16 %v266, %v265
  %v284 = vpack.c.b16 %v268, %v267
  %301 = vmatpush.bf16.msra.mxu0 %v276
  %302 = vmatpush.bf16.msra.mxu0 %v275
  %303 = vmatpush.bf16.msra.mxu0 %v274
  %304 = vmatpush.bf16.msra.mxu0 %v273
  %305 = vmatpush.bf16.msra.mxu0 %v272
  %306 = vmatpush.bf16.msra.mxu0 %v271
  %307 = vmatpush.bf16.msra.mxu0 %v270
  %308 = vmatpush.bf16.msra.mxu0 %v269
  %309 = vmatmul.bf16.gmra.mxu0 %v167
  %v310 = vpop.f32.mrf.mxu0
  %v311 = vadd.f32 %v203, %v310
  %v312 = vpop.f32.mrf.mxu0
  %313 = vdwg.mxu0
  %314 = vmatpush.bf16.msra.mxu0 %v284
  %315 = vmatpush.bf16.msra.mxu0 %v283
  %316 = vmatpush.bf16.msra.mxu0 %v282
  %317 = vmatpush.bf16.msra.mxu0 %v281
  %318 = vmatpush.bf16.msra.mxu0 %v280
  %319 = vmatpush.bf16.msra.mxu0 %v279
  %320 = vmatpush.bf16.msra.mxu0 %v278
  %321 = vmatpush.bf16.msra.mxu0 %v277
  %322 = vmatmul.bf16.gmra.mxu0 %v168
  %v323 = vpop.f32.mrf.mxu0
  %v324 = vadd.f32 %v311, %v323
  %v325 = vpop.f32.mrf.mxu0
  %326 = vdwg.mxu0
  %v327 = vmax.f32 %v324, 0.0
  %v328 = vunpack.c.l.bf16 %v20
  %v329 = vadd.f32 %v327, %v328
  %330 = vst [vmem:[%s5] sm:$0xf] %v329
  // Predicated region
  $region22: #{mlp_block_forward.1} parent=0 // pred_check
    _
  $region23: #{mlp_block_forward.1} parent=0 // pred_check_branch
    %332 = sbr.rel (0) target = $region25
  $region24: #{mlp_block_forward.1} parent=0 // pred_region
    _
  $region25: #{mlp_block_forward.1} parent=0 // pred_fallthru
    _
  // Predicated region
  $region26: #{mlp_block_forward.1} parent=0 // pred_check
    _
  $region27: #{mlp_block_forward.1} parent=0 // pred_check_branch
    %334 = sbr.rel (0) target = $region29
  $region28: #{mlp_block_forward.1} parent=0 // pred_region
    _
  $region29: #{mlp_block_forward.1} parent=0 // pred_fallthru
    _

</llo_original>
